<compile_context>
chip_gen: v7x
topology: tpu7x:2x2x1
jax: 0.10.0
libtpu: 0.0.40
codegen_flags: <defaults>
</compile_context>

<pallas_src>
import functools
import math

import jax
import jax.numpy as jnp
from jax.experimental import pallas as pl
from jax.experimental.pallas import tpu as pltpu


# ---------------------------------------------------------------------------
# Tile selection / VMEM budgeting helpers
# ---------------------------------------------------------------------------
_LANE_TILES = (2048, 1024, 512, 256, 128)
_VMEM_BUDGET_DEFAULT = 36 * (1 << 20)   # tile-footprint target, fits every gen
_VMEM_LIMIT_CAP = 48 * (1 << 20)        # scoped-VMEM request cap (v7x-safe)


def _tile_options(dim, candidates):
    opts = [c for c in candidates if c <= dim and dim % c == 0]
    return opts if opts else [dim]       # full-dim block is always legal


def _pick_tm(M):
    for c in (256, 128, 64, 32, 16, 8):
        if c <= M and M % c == 0:
            return c
    return M


def _footprint_bytes(tm, tk, tn, *, n_weight_streams, w_bytes,
                     x_bytes=4, eps_bytes=4, out_bytes=4):
    """Approximate VMEM footprint of one grid step (inputs/output double-buffered)."""
    wt = n_weight_streams * tk * tn * w_bytes
    xt = tm * tk * x_bytes
    et = tm * tn * eps_bytes
    ot = tm * tn * out_bytes
    acc = 2 * tm * tn * 4                 # two f32 accumulators (single-buffered)
    return 2 * (wt + xt + et + ot) + acc


def _auto_tiles(M, K, N, *, n_weight_streams, w_bytes, vmem_budget_bytes):
    """Small-batch heuristic: pin tm to M, grow tk/tn under the VMEM budget."""
    tm = _pick_tm(M)
    tk_opts = _tile_options(K, _LANE_TILES)
    tn_opts = _tile_options(N, _LANE_TILES)
    best = None
    for tk in tk_opts:
        for tn in tn_opts:
            fp = _footprint_bytes(tm, tk, tn, n_weight_streams=n_weight_streams,
                                  w_bytes=w_bytes)
            if fp > vmem_budget_bytes:
                continue
            key = (tk * tn, tk)           # fewest grid steps; prefer longer K tiles
            if best is None or key > best[0]:
                best = (key, (tk, tn, fp))
    if best is None:                      # budget too small: take the smallest tiles
        tk, tn = min(tk_opts), min(tn_opts)
        fp = _footprint_bytes(tm, tk, tn, n_weight_streams=n_weight_streams,
                              w_bytes=w_bytes)
        return tm, tk, tn, fp
    tk, tn, fp = best[1]
    return tm, tk, tn, fp


def _compiler_params(footprint_bytes):
    vmem_limit = int(min(_VMEM_LIMIT_CAP, footprint_bytes + 16 * (1 << 20)))
    # Note: plain "parallel" already allows megacore sharding of the (i, j)
    # axes on v7x; pltpu.CORE_PARALLEL on the N axis is a possible further
    # tweak but is left off to stay generation-portable.
    return pltpu.CompilerParams(
        dimension_semantics=("parallel", "parallel", "arbitrary"),
        vmem_limit_bytes=vmem_limit,
    )


# ---------------------------------------------------------------------------
# Fused kernel: per-tile (m,pi,chi)->(mu,var_w) transform + dual matmul
# ---------------------------------------------------------------------------
def _sas_fused_kernel(x_ref, m_ref, pi_ref, chi_ref, eps_ref, o_ref,
                      g_acc, d_acc, *, mxu_dtype):
    k = pl.program_id(2)

    # VPU weight transform, fused into the k-loop: no mu/var_w HBM round trip.
    m = m_ref[...].astype(jnp.float32)
    pi = pi_ref[...].astype(jnp.float32)
    chi = chi_ref[...].astype(jnp.float32)
    one_minus_pi = 1.0 - pi
    mu = one_minus_pi * m
    # Cancellation-free rho - mu^2 (assumes clamp(): pi in [0,1], chi >= 0).
    var_w = one_minus_pi * chi + pi * one_minus_pi * (m * m)

    x = x_ref[...].astype(jnp.float32)
    g = jnp.dot(x.astype(mxu_dtype), mu.astype(mxu_dtype),
                preferred_element_type=jnp.float32)
    d = jnp.dot((x * x).astype(mxu_dtype), var_w.astype(mxu_dtype),
                preferred_element_type=jnp.float32)

    # Skip the separate zero-init pass: assign on the first k step.
    @pl.when(k == 0)
    def _():
        g_acc[...] = g
        d_acc[...] = d

    @pl.when(k > 0)
    def _():
        g_acc[...] += g
        d_acc[...] += d

    @pl.when(k == pl.num_programs(2) - 1)
    def _():
        z = g_acc[...] + eps_ref[...].astype(jnp.float32) * jnp.sqrt(d_acc[...] + 1e-10)
        o_ref[...] = z.astype(o_ref.dtype)


def sas_layer(x, m, pi, chi, epsilon, *, mxu_dtype=jnp.bfloat16,
              out_dtype=jnp.float32, tm=None, tn=None, tk=None,
              weight_buffers=None, vmem_budget_bytes=_VMEM_BUDGET_DEFAULT):
    """Fused forward: streams m/pi/chi once, transforms per tile, dual-matmuls."""
    M, K = x.shape
    K2, N = m.shape
    assert K == K2 and pi.shape == m.shape and chi.shape == m.shape
    assert epsilon.shape == (M, N)

    w_bytes = jnp.dtype(m.dtype).itemsize
    a_tm, a_tk, a_tn, _ = _auto_tiles(M, K, N, n_weight_streams=3, w_bytes=w_bytes,
                                      vmem_budget_bytes=vmem_budget_bytes)
    tm = a_tm if tm is None else min(tm, M)
    tk = a_tk if tk is None else min(tk, K)
    tn = a_tn if tn is None else min(tn, N)
    assert M % tm == 0 and N % tn == 0 and K % tk == 0, "dims must divide tiles"

    footprint = _footprint_bytes(
        tm, tk, tn, n_weight_streams=3, w_bytes=w_bytes,
        x_bytes=jnp.dtype(x.dtype).itemsize,
        eps_bytes=jnp.dtype(epsilon.dtype).itemsize,
        out_bytes=jnp.dtype(out_dtype).itemsize)

    w_spec_kwargs = {}
    if weight_buffers is not None:
        w_spec_kwargs["pipeline_mode"] = pl.Buffered(weight_buffers)

    def w_spec():
        return pl.BlockSpec((tk, tn), lambda i, j, k: (k, j), **w_spec_kwargs)

    cost = pl.CostEstimate(
        flops=4 * M * K * N,
        transcendentals=M * N,
        bytes_accessed=M * K * jnp.dtype(x.dtype).itemsize
        + 3 * K * N * w_bytes + 2 * M * N * 4,
    )

    return pl.pallas_call(
        functools.partial(_sas_fused_kernel, mxu_dtype=mxu_dtype),
        out_shape=jax.ShapeDtypeStruct((M, N), out_dtype),
        grid_spec=pltpu.PrefetchScalarGridSpec(
            num_scalar_prefetch=0,
            grid=(M // tm, N // tn, K // tk),
            in_specs=[
                pl.BlockSpec((tm, tk), lambda i, j, k: (i, k)),   # x
                w_spec(),                                         # m
                w_spec(),                                         # pi
                w_spec(),                                         # chi
                pl.BlockSpec((tm, tn), lambda i, j, k: (i, j)),   # epsilon
            ],
            out_specs=pl.BlockSpec((tm, tn), lambda i, j, k: (i, j)),
            scratch_shapes=[
                pltpu.VMEM((tm, tn), jnp.float32),   # G accumulator
                pltpu.VMEM((tm, tn), jnp.float32),   # DeltaSquare accumulator
            ],
        ),
        compiler_params=_compiler_params(footprint),
        cost_estimate=cost,
    )(x, m, pi, chi, epsilon)


# ---------------------------------------------------------------------------
# Cached-weight path: one-time prep to bf16 (mu, var_w), then cheap applies
# ---------------------------------------------------------------------------
def _weight_prep_kernel(m_ref, pi_ref, chi_ref, mu_ref, varw_ref):
    m = m_ref[...].astype(jnp.float32)
    pi = pi_ref[...].astype(jnp.float32)
    chi = chi_ref[...].astype(jnp.float32)
    one_minus_pi = 1.0 - pi
    mu = one_minus_pi * m
    var_w = one_minus_pi * chi + pi * one_minus_pi * (m * m)
    mu_ref[...] = mu.astype(mu_ref.dtype)
    varw_ref[...] = var_w.astype(varw_ref.dtype)


def sas_prepare_weights(m, pi, chi, *, weight_dtype=jnp.bfloat16):
    """Precompute (mu, var_w) once; cache across forwards until params change."""
    K, N = m.shape
    tk = _tile_options(K, (512, 256, 128))[0]
    tn = _tile_options(N, (512, 256, 128))[0]
    return pl.pallas_call(
        _weight_prep_kernel,
        out_shape=(
            jax.ShapeDtypeStruct((K, N), weight_dtype),
            jax.ShapeDtypeStruct((K, N), weight_dtype),
        ),
        grid_spec=pltpu.PrefetchScalarGridSpec(
            num_scalar_prefetch=0,
            grid=(K // tk, N // tn),
            in_specs=[
                pl.BlockSpec((tk, tn), lambda i, j: (i, j)),
                pl.BlockSpec((tk, tn), lambda i, j: (i, j)),
                pl.BlockSpec((tk, tn), lambda i, j: (i, j)),
            ],
            out_specs=[
                pl.BlockSpec((tk, tn), lambda i, j: (i, j)),
                pl.BlockSpec((tk, tn), lambda i, j: (i, j)),
            ],
        ),
        compiler_params=pltpu.CompilerParams(
            dimension_semantics=("parallel", "parallel")),
    )(m, pi, chi)


def _sas_apply_kernel(x_ref, mu_ref, varw_ref, eps_ref, o_ref, g_acc, d_acc):
    k = pl.program_id(2)
    w_dtype = mu_ref.dtype

    x = x_ref[...].astype(jnp.float32)
    g = jnp.dot(x.astype(w_dtype), mu_ref[...], preferred_element_type=jnp.float32)
    d = jnp.dot((x * x).astype(w_dtype), varw_ref[...],
                preferred_element_type=jnp.float32)

    @pl.when(k == 0)
    def _():
        g_acc[...] = g
        d_acc[...] = d

    @pl.when(k > 0)
    def _():
        g_acc[...] += g
        d_acc[...] += d

    @pl.when(k == pl.num_programs(2) - 1)
    def _():
        z = g_acc[...] + eps_ref[...].astype(jnp.float32) * jnp.sqrt(d_acc[...] + 1e-10)
        o_ref[...] = z.astype(o_ref.dtype)


def sas_apply(x, mu, var_w, epsilon, *, out_dtype=jnp.float32, tm=None, tn=None,
              tk=None, weight_buffers=None, vmem_budget_bytes=_VMEM_BUDGET_DEFAULT):
    M, K = x.shape
    K2, N = mu.shape
    assert K == K2 and var_w.shape == mu.shape and epsilon.shape == (M, N)

    w_bytes = jnp.dtype(mu.dtype).itemsize
    a_tm, a_tk, a_tn, _ = _auto_tiles(M, K, N, n_weight_streams=2, w_bytes=w_bytes,
                                      vmem_budget_bytes=vmem_budget_bytes)
    tm = a_tm if tm is None else min(tm, M)
    tk = a_tk if tk is None else min(tk, K)
    tn = a_tn if tn is None else min(tn, N)
    assert M % tm == 0 and N % tn == 0 and K % tk == 0, "dims must divide tiles"

    footprint = _footprint_bytes(
        tm, tk, tn, n_weight_streams=2, w_bytes=w_bytes,
        x_bytes=jnp.dtype(x.dtype).itemsize,
        eps_bytes=jnp.dtype(epsilon.dtype).itemsize,
        out_bytes=jnp.dtype(out_dtype).itemsize)

    w_spec_kwargs = {}
    if weight_buffers is not None:
        w_spec_kwargs["pipeline_mode"] = pl.Buffered(weight_buffers)

    def w_spec():
        return pl.BlockSpec((tk, tn), lambda i, j, k: (k, j), **w_spec_kwargs)

    cost = pl.CostEstimate(
        flops=4 * M * K * N,
        transcendentals=M * N,
        bytes_accessed=M * K * jnp.dtype(x.dtype).itemsize
        + 2 * K * N * w_bytes + 2 * M * N * 4,
    )

    return pl.pallas_call(
        _sas_apply_kernel,
        out_shape=jax.ShapeDtypeStruct((M, N), out_dtype),
        grid_spec=pltpu.PrefetchScalarGridSpec(
            num_scalar_prefetch=0,
            grid=(M // tm, N // tn, K // tk),
            in_specs=[
                pl.BlockSpec((tm, tk), lambda i, j, k: (i, k)),   # x
                w_spec(),                                         # mu
                w_spec(),                                         # var_w
                pl.BlockSpec((tm, tn), lambda i, j, k: (i, j)),   # epsilon
            ],
            out_specs=pl.BlockSpec((tm, tn), lambda i, j, k: (i, j)),
            scratch_shapes=[
                pltpu.VMEM((tm, tn), jnp.float32),
                pltpu.VMEM((tm, tn), jnp.float32),
            ],
        ),
        compiler_params=_compiler_params(footprint),
        cost_estimate=cost,
    )(x, mu, var_w, epsilon)


# ---------------------------------------------------------------------------
# Pure-JAX reference (mirrors the PyTorch forward exactly)
# ---------------------------------------------------------------------------
def sas_layer_ref(x, m, pi, chi, epsilon):
    mu = (1.0 - pi) * m
    rho = (1.0 - pi) * (chi + m ** 2)
    G = jnp.dot(x, mu, precision="highest")
    ds = jnp.dot(x ** 2, rho - mu ** 2, precision="highest")
    return G + epsilon * jnp.sqrt(ds + 1e-10)


if __name__ == "__main__":
    # Small PTB-ish dense-layer shapes; N != K to catch transposition bugs.
    B, inF, outF = 16, 256, 512

    key = jax.random.PRNGKey(0)
    k_x, k_m, k_pi, k_chi, k_eps = jax.random.split(key, 5)

    x = jax.random.normal(k_x, (B, inF), dtype=jnp.float32)

    # Parameter init mirroring resetParameters(); pi/chi given nonzero values
    # (within the ranges enforced by clamp()) so the variance path is tested.
    bound = 1.0 / math.sqrt(inF)
    m = jax.random.uniform(k_m, (inF, outF), minval=-bound, maxval=bound,
                           dtype=jnp.float32)
    pi = jax.random.uniform(k_pi, (inF, outF), minval=0.0, maxval=0.5,
                            dtype=jnp.float32)
    chi = jax.random.uniform(k_chi, (inF, outF), minval=0.0, maxval=0.1,
                             dtype=jnp.float32)

    # Deterministic epsilon (stand-in for torch.normal(0, 1, ...)).
    eps = jax.random.normal(k_eps, (B, outF), dtype=jnp.float32)

    ref = sas_layer_ref(x, m, pi, chi, eps)

    # 1) Fused path, f32 MXU operands, small tiles forcing grid (1, 4, 2)
    #    (exercises k-accumulation + multi-N tiles). Tight tolerance.
    out_f32 = jax.block_until_ready(
        sas_layer(x, m, pi, chi, eps, mxu_dtype=jnp.float32,
                  tm=16, tn=128, tk=128))
    assert out_f32.shape == (B, outF)
    assert jnp.allclose(out_f32, ref, atol=1e-4, rtol=1e-4), (
        "fused f32 max abs err", float(jnp.max(jnp.abs(out_f32 - ref))))

    # 2) Fused path, default bf16 MXU operands, auto-chosen (large) tiles.
    out_bf16 = jax.block_until_ready(sas_layer(x, m, pi, chi, eps))
    assert jnp.allclose(out_bf16, ref, atol=1e-1, rtol=1e-1), (
        "fused bf16 max abs err", float(jnp.max(jnp.abs(out_bf16 - ref))))

    # 3) Cached path: bf16 (mu, var_w) computed once, applied with small tiles.
    mu_c, varw_c = sas_prepare_weights(m, pi, chi)
    out_cached = jax.block_until_ready(
        sas_apply(x, mu_c, varw_c, eps, tm=16, tn=128, tk=128))
    assert jnp.allclose(out_cached, ref, atol=1e-1, rtol=1e-1), (
        "cached bf16 max abs err", float(jnp.max(jnp.abs(out_cached - ref))))

    print("KERNEL_OK")
</pallas_src>

<mosaic_0001>
module attributes {stable_mosaic.version = 11 : i64} {
  func.func @_sas_fused_kernel(%arg0: i32, %arg1: i32, %arg2: i32, %arg3: memref<16x128xf32, #tpu.memory_space<vmem>>, %arg4: memref<128x128xf32, #tpu.memory_space<vmem>>, %arg5: memref<128x128xf32, #tpu.memory_space<vmem>>, %arg6: memref<128x128xf32, #tpu.memory_space<vmem>>, %arg7: memref<16x128xf32, #tpu.memory_space<vmem>>, %arg8: memref<16x128xf32, #tpu.memory_space<vmem>>, %arg9: memref<16x128xf32, #tpu.memory_space<vmem>>, %arg10: memref<16x128xf32, #tpu.memory_space<vmem>>) attributes {dimension_semantics = [#tpu.dimension_semantics<parallel>, #tpu.dimension_semantics<parallel>, #tpu.dimension_semantics<arbitrary>], iteration_bounds = array<i64: 1, 4, 2>, scalar_prefetch = 0 : i64, scratch_operands = 2 : i64, tpu.core_type = #tpu.core_type<tc>, window_params = [{transform_indices = @transform_0, window_bounds = array<i64: 16, 128>}, {transform_indices = @transform_1, window_bounds = array<i64: 128, 128>}, {transform_indices = @transform_2, window_bounds = array<i64: 128, 128>}, {transform_indices = @transform_3, window_bounds = array<i64: 128, 128>}, {transform_indices = @transform_4, window_bounds = array<i64: 16, 128>}, {transform_indices = @transform_5, window_bounds = array<i64: 16, 128>}]} {
    %c0 = arith.constant 0 : index
    %c0_0 = arith.constant 0 : index
    %0 = vector.load %arg4[%c0, %c0_0] : memref<128x128xf32, #tpu.memory_space<vmem>>, vector<128x128xf32>
    %c0_1 = arith.constant 0 : index
    %c0_2 = arith.constant 0 : index
    %1 = vector.load %arg5[%c0_1, %c0_2] : memref<128x128xf32, #tpu.memory_space<vmem>>, vector<128x128xf32>
    %c0_3 = arith.constant 0 : index
    %c0_4 = arith.constant 0 : index
    %2 = vector.load %arg6[%c0_3, %c0_4] : memref<128x128xf32, #tpu.memory_space<vmem>>, vector<128x128xf32>
    %cst = arith.constant 1.000000e+00 : f32
    %3 = vector.broadcast %cst : f32 to vector<128x128xf32>
    %4 = arith.subf %3, %1 : vector<128x128xf32>
    %5 = arith.mulf %4, %0 : vector<128x128xf32>
    %6 = arith.mulf %4, %2 : vector<128x128xf32>
    %7 = arith.mulf %1, %4 : vector<128x128xf32>
    %8 = arith.mulf %0, %0 : vector<128x128xf32>
    %9 = arith.mulf %7, %8 : vector<128x128xf32>
    %10 = arith.addf %6, %9 : vector<128x128xf32>
    %c0_5 = arith.constant 0 : index
    %c0_6 = arith.constant 0 : index
    %11 = vector.load %arg3[%c0_5, %c0_6] : memref<16x128xf32, #tpu.memory_space<vmem>>, vector<16x128xf32>
    %cst_7 = arith.constant dense<0.000000e+00> : vector<16x128xf32>
    %12 = tpu.matmul %11, %5, %cst_7 {dimension_numbers = #tpu.dot_dimension_numbers<[1], [0], [0], [1], [0, 0, 1, 1], [], []>} : vector<16x128xf32>, vector<128x128xf32>, vector<16x128xf32> -> vector<16x128xf32>
    %13 = arith.mulf %11, %11 : vector<16x128xf32>
    %cst_8 = arith.constant dense<0.000000e+00> : vector<16x128xf32>
    %14 = tpu.matmul %13, %10, %cst_8 {dimension_numbers = #tpu.dot_dimension_numbers<[1], [0], [0], [1], [0, 0, 1, 1], [], []>} : vector<16x128xf32>, vector<128x128xf32>, vector<16x128xf32> -> vector<16x128xf32>
    %c0_i32 = arith.constant 0 : i32
    %15 = arith.cmpi eq, %arg2, %c0_i32 : i32
    %16 = arith.extui %15 : i1 to i32
    %c0_i32_9 = arith.constant 0 : i32
    %17 = arith.cmpi ne, %16, %c0_i32_9 : i32
    scf.if %17 {
      %c0_13 = arith.constant 0 : index
      %c0_14 = arith.constant 0 : index
      %24 = vector.load %arg9[%c0_13, %c0_14] : memref<16x128xf32, #tpu.memory_space<vmem>>, vector<16x128xf32>
      tpu.vector_store %arg9[%c0_13, %c0_14], %12 {strides = array<i32>} : memref<16x128xf32, #tpu.memory_space<vmem>>, vector<16x128xf32>,
      %c0_15 = arith.constant 0 : index
      %c0_16 = arith.constant 0 : index
      %25 = vector.load %arg10[%c0_15, %c0_16] : memref<16x128xf32, #tpu.memory_space<vmem>>, vector<16x128xf32>
      tpu.vector_store %arg10[%c0_15, %c0_16], %14 {strides = array<i32>} : memref<16x128xf32, #tpu.memory_space<vmem>>, vector<16x128xf32>,
    } else {
    }
    %c0_i32_10 = arith.constant 0 : i32
    %18 = arith.cmpi sgt, %arg2, %c0_i32_10 : i32
    %19 = arith.extui %18 : i1 to i32
    %c0_i32_11 = arith.constant 0 : i32
    %20 = arith.cmpi ne, %19, %c0_i32_11 : i32
    scf.if %20 {
      %c0_13 = arith.constant 0 : index
      %c0_14 = arith.constant 0 : index
      %24 = vector.load %arg9[%c0_13, %c0_14] : memref<16x128xf32, #tpu.memory_space<vmem>>, vector<16x128xf32>
      %25 = arith.addf %24, %12 : vector<16x128xf32>
      %c0_15 = arith.constant 0 : index
      %c0_16 = arith.constant 0 : index
      %26 = vector.load %arg9[%c0_15, %c0_16] : memref<16x128xf32, #tpu.memory_space<vmem>>, vector<16x128xf32>
      tpu.vector_store %arg9[%c0_15, %c0_16], %25 {strides = array<i32>} : memref<16x128xf32, #tpu.memory_space<vmem>>, vector<16x128xf32>,
      %c0_17 = arith.constant 0 : index
      %c0_18 = arith.constant 0 : index
      %27 = vector.load %arg10[%c0_17, %c0_18] : memref<16x128xf32, #tpu.memory_space<vmem>>, vector<16x128xf32>
      %28 = arith.addf %27, %14 : vector<16x128xf32>
      %c0_19 = arith.constant 0 : index
      %c0_20 = arith.constant 0 : index
      %29 = vector.load %arg10[%c0_19, %c0_20] : memref<16x128xf32, #tpu.memory_space<vmem>>, vector<16x128xf32>
      tpu.vector_store %arg10[%c0_19, %c0_20], %28 {strides = array<i32>} : memref<16x128xf32, #tpu.memory_space<vmem>>, vector<16x128xf32>,
    } else {
    }
    %c1_i32 = arith.constant 1 : i32
    %21 = arith.cmpi eq, %arg2, %c1_i32 : i32
    %22 = arith.extui %21 : i1 to i32
    %c0_i32_12 = arith.constant 0 : i32
    %23 = arith.cmpi ne, %22, %c0_i32_12 : i32
    scf.if %23 {
      %c0_13 = arith.constant 0 : index
      %c0_14 = arith.constant 0 : index
      %24 = vector.load %arg9[%c0_13, %c0_14] : memref<16x128xf32, #tpu.memory_space<vmem>>, vector<16x128xf32>
      %c0_15 = arith.constant 0 : index
      %c0_16 = arith.constant 0 : index
      %25 = vector.load %arg7[%c0_15, %c0_16] : memref<16x128xf32, #tpu.memory_space<vmem>>, vector<16x128xf32>
      %c0_17 = arith.constant 0 : index
      %c0_18 = arith.constant 0 : index
      %26 = vector.load %arg10[%c0_17, %c0_18] : memref<16x128xf32, #tpu.memory_space<vmem>>, vector<16x128xf32>
      %cst_19 = arith.constant 1.000000e-10 : f32
      %27 = vector.broadcast %cst_19 : f32 to vector<16x128xf32>
      %28 = arith.addf %26, %27 : vector<16x128xf32>
      %29 = math.sqrt %28 : vector<16x128xf32>
      %30 = arith.mulf %25, %29 : vector<16x128xf32>
      %31 = arith.addf %24, %30 : vector<16x128xf32>
      %c0_20 = arith.constant 0 : index
      %c0_21 = arith.constant 0 : index
      %32 = vector.load %arg8[%c0_20, %c0_21] : memref<16x128xf32, #tpu.memory_space<vmem>>, vector<16x128xf32>
      tpu.vector_store %arg8[%c0_20, %c0_21], %31 {strides = array<i32>} : memref<16x128xf32, #tpu.memory_space<vmem>>, vector<16x128xf32>,
    } else {
    }
    return
  }
  func.func @transform_0(%arg0: i32, %arg1: i32, %arg2: i32) -> (i32, i32) {
    %c0_i32 = arith.constant 0 : i32
    return %arg0, %arg2 : i32, i32
  }
  func.func @transform_1(%arg0: i32, %arg1: i32, %arg2: i32) -> (i32, i32) {
    %c0_i32 = arith.constant 0 : i32
    return %arg2, %arg1 : i32, i32
  }
  func.func @transform_2(%arg0: i32, %arg1: i32, %arg2: i32) -> (i32, i32) {
    %c0_i32 = arith.constant 0 : i32
    return %arg2, %arg1 : i32, i32
  }
  func.func @transform_3(%arg0: i32, %arg1: i32, %arg2: i32) -> (i32, i32) {
    %c0_i32 = arith.constant 0 : i32
    return %arg2, %arg1 : i32, i32
  }
  func.func @transform_4(%arg0: i32, %arg1: i32, %arg2: i32) -> (i32, i32) {
    %c0_i32 = arith.constant 0 : i32
    return %arg0, %arg1 : i32, i32
  }
  func.func @transform_5(%arg0: i32, %arg1: i32, %arg2: i32) -> (i32, i32) {
    %c0_i32 = arith.constant 0 : i32
    return %arg0, %arg1 : i32, i32
  }
}

</mosaic_0001>

<llo_original>
// kernel: tpu_custom_call.1
$region0: #{tpu_custom_call.1}
  #allocation0 [shape = 'u32[]', space=smem, size = 0x4, offset = 0x4, fixed_abs, tag = 'smem constant byte address 0x4 - core index']
  #allocation1 [shape = 'u32[144,128]{1,0:T(1,128)}', space=vmem, size = 0x12000, scoped, tag = 'internal scratch']
  #allocation2 [shape = 'f32[16,128]{1,0:T(8,128)}', space=vmem, size = 0x2000, scoped, tag = 'scratch operand']
  #allocation3 [shape = 'f32[16,128]{1,0:T(8,128)}', space=vmem, size = 0x2000, scoped, tag = 'scratch operand']
  %s0 = inlined_call_operand.hbm [shape: f32[16,256], index: 0, kind: input, shape index: {}]
  %s1 = inlined_call_operand.hbm [shape: f32[256,512], index: 1, kind: input, shape index: {}]
  %s2 = inlined_call_operand.hbm [shape: f32[256,512], index: 2, kind: input, shape index: {}]
  %s3 = inlined_call_operand.hbm [shape: f32[256,512], index: 3, kind: input, shape index: {}]
  %s4 = inlined_call_operand.hbm [shape: f32[16,512], index: 4, kind: input, shape index: {}]
  %s5 = inlined_call_operand.hbm [shape: f32[16,512], index: 5, kind: output, shape index: {}]
  %s6 = sld [smem:[#allocation0]]
  $region85: #{tpu_custom_call.1} parent=0
    _
  %s8 = ssub.s32 1, %s6
  %s9 = scalar_select 0, %s8, %s6
  $region1: #{tpu_custom_call.1} parent=0
    #allocation4 [shape = 'u8[16384]{0}', space=vmem, size = 0x4000, scoped, tag = 'input window, operand 0']
    #allocation5 [shape = 's32[2]{0}', space=sflag, size = 0x8, scoped, tag = 'scoped memory for tpu_custom_call.1']
    #allocation6 [shape = 's32[2]{0}', space=sflag, size = 0x8, scoped, tag = 'scoped memory for tpu_custom_call.1']
    #allocation7 [shape = 'u8[131072]{0}', space=vmem, size = 0x20000, scoped, tag = 'input window, operand 1']
    #allocation8 [shape = 's32[2]{0}', space=sflag, size = 0x8, scoped, tag = 'scoped memory for tpu_custom_call.1']
    #allocation9 [shape = 'u8[131072]{0}', space=vmem, size = 0x20000, scoped, tag = 'input window, operand 2']
    #allocation10 [shape = 'u8[131072]{0}', space=vmem, size = 0x20000, scoped, tag = 'input window, operand 3']
    #allocation11 [shape = 's32[2]{0}', space=sflag, size = 0x8, scoped, tag = 'scoped memory for tpu_custom_call.1']
    #allocation12 [shape = 'u8[16384]{0}', space=vmem, size = 0x4000, scoped, tag = 'input window, operand 4']
    #allocation13 [shape = 'u8[16384]{0}', space=vmem, size = 0x4000, scoped, tag = 'output window, operand 0']
    %10 = vsyncpa [#allocation5], 0
    %s11 = scalar_lea.sflag [#allocation5], 1
    %12 = vsyncpa %s11, 0
    %13 = vsyncpa [#allocation8], 0
    %s14 = scalar_lea.sflag [#allocation8], 1
    %15 = vsyncpa %s14, 0
    %16 = vsyncpa [#allocation11], 0
    %s17 = scalar_lea.sflag [#allocation11], 1
    %18 = vsyncpa %s17, 0
    %19 = vsyncpa [#allocation6], 0
    %s20 = scalar_lea.sflag [#allocation6], 1
    %21 = vsyncpa %s20, 0
    loop: start=0, step=1, limit=10
    $region2: #{tpu_custom_call.1} parent=1 // loop_pre_header
      _
    $region3: #{tpu_custom_call.1} parent=1 // loop_header
      %s23 = sphi 0, %s27
      %p24 = scmp.ge.s32.totalorder %s23, 10
      %s30 = sphi 0, %s49
      %s31 = sphi 0, %s45
      %s32 = sphi 0, %s41
      %s33 = sphi 0, %s30
      %s34 = sphi 0, %s31
      %s35 = sphi 0, %s32
      %s36 = sphi 0, %s33
      %s37 = sphi 0, %s34
      %s38 = sphi 0, %s35
      %s54 = sphi 0, %s56
      %s57 = sphi 0, %s54
      %s58 = sphi 0, %s57
      %s74 = sphi 0, %s58
      %s82 = sphi 0, %s84
      %s85 = sphi 0, %s82
      %s86 = sphi 0, %s85
      %s102 = sphi 0, %s86
      %s110 = sphi 0, %s112
      %s113 = sphi 0, %s110
      %s114 = sphi 0, %s113
      %s130 = sphi 0, %s114
      %s138 = sphi 0, %s140
      %s141 = sphi 0, %s138
      %s142 = sphi 0, %s141
      %s158 = sphi 0, %s142
      %s166 = sphi 0, %s168
      %s169 = sphi 0, %s166
      %s170 = sphi 0, %s169
      %s186 = sphi 0, %s170
      %s194 = sphi 0, %s196
      %s197 = sphi 0, %s194
      %s198 = sphi 0, %s197
      %s214 = sphi 0, %s198
    $region4: #{tpu_custom_call.1} parent=1 // loop_header_branch
      %26 = sbr.rel (%p24) target = $region8
    $region5: #{tpu_custom_call.1} parent=1 // loop_body
      %s28 = ssub.s32 %s23, 1
      %s29 = ssub.s32 %s23, 2
      %s39 = sadd.s32 1, %s32
      %p40 = scmp.ge.s32.totalorder %s39, 2
      %s41 = scalar_select %p40, 0, %s39
      %s42 = sadd.s32 1, %s31
      %s43 = scalar_select %p40, %s42, %s31
      %p44 = scmp.ge.s32.totalorder %s43, 4
      %s45 = scalar_select %p44, 0, %s43
      %s46 = sadd.s32 1, %s30
      %s47 = scalar_select %p44, %s46, %s30
      %p48 = scmp.ge.s32.totalorder %s47, 1
      %s49 = scalar_select %p48, 0, %s47
      %s50 = ssub.s32 %s30, %s49
      %s51 = ssub.s32 %s32, %s41
      %s52 = sor.u32 %s50, %s51
      %p53 = scmp.eq.s32.totalorder %s52, 0
      %s55 = sadd.s32 %s54, 1
      %s56 = scalar_select %p53, %s54, %s55
      %p59 = pneg %p53
      %p60 = scmp.eq.s32.totalorder %s23, 7
      %p61 = por %p59, %p60
      %p62 = scmp.ne.s32.totalorder %s54, %s57
      %p63 = scmp.eq.s32.totalorder %s23, 0
      %p64 = por %p62, %p63
      %p65 = scmp.ne.s32.totalorder %s54, %s57
      %p66 = scmp.eq.s32.totalorder %s28, 7
      %p67 = por %p65, %p66
      %p68 = scmp.ne.s32.totalorder %s57, %s58
      %p69 = scmp.eq.s32.totalorder %s28, 0
      %p70 = por %p68, %p69
      %p71 = scmp.ne.s32.totalorder %s57, %s58
      %p72 = scmp.eq.s32.totalorder %s29, 7
      %p73 = por %p71, %p72
      %p75 = scmp.ne.s32.totalorder %s58, %s74
      %p76 = scmp.eq.s32.totalorder %s29, 0
      %p77 = por %p75, %p76
      %s78 = ssub.s32 %s32, %s41
      %s79 = ssub.s32 %s31, %s45
      %s80 = sor.u32 %s78, %s79
      %p81 = scmp.eq.s32.totalorder %s80, 0
      %s83 = sadd.s32 %s82, 1
      %s84 = scalar_select %p81, %s82, %s83
      %p87 = pneg %p81
      %p88 = scmp.eq.s32.totalorder %s23, 7
      %p89 = por %p87, %p88
      %p90 = scmp.ne.s32.totalorder %s82, %s85
      %p91 = scmp.eq.s32.totalorder %s23, 0
      %p92 = por %p90, %p91
      %p93 = scmp.ne.s32.totalorder %s82, %s85
      %p94 = scmp.eq.s32.totalorder %s28, 7
      %p95 = por %p93, %p94
      %p96 = scmp.ne.s32.totalorder %s85, %s86
      %p97 = scmp.eq.s32.totalorder %s28, 0
      %p98 = por %p96, %p97
      %p99 = scmp.ne.s32.totalorder %s85, %s86
      %p100 = scmp.eq.s32.totalorder %s29, 7
      %p101 = por %p99, %p100
      %p103 = scmp.ne.s32.totalorder %s86, %s102
      %p104 = scmp.eq.s32.totalorder %s29, 0
      %p105 = por %p103, %p104
      %s106 = ssub.s32 %s32, %s41
      %s107 = ssub.s32 %s31, %s45
      %s108 = sor.u32 %s106, %s107
      %p109 = scmp.eq.s32.totalorder %s108, 0
      %s111 = sadd.s32 %s110, 1
      %s112 = scalar_select %p109, %s110, %s111
      %p115 = pneg %p109
      %p116 = scmp.eq.s32.totalorder %s23, 7
      %p117 = por %p115, %p116
      %p118 = scmp.ne.s32.totalorder %s110, %s113
      %p119 = scmp.eq.s32.totalorder %s23, 0
      %p120 = por %p118, %p119
      %p121 = scmp.ne.s32.totalorder %s110, %s113
      %p122 = scmp.eq.s32.totalorder %s28, 7
      %p123 = por %p121, %p122
      %p124 = scmp.ne.s32.totalorder %s113, %s114
      %p125 = scmp.eq.s32.totalorder %s28, 0
      %p126 = por %p124, %p125
      %p127 = scmp.ne.s32.totalorder %s113, %s114
      %p128 = scmp.eq.s32.totalorder %s29, 7
      %p129 = por %p127, %p128
      %p131 = scmp.ne.s32.totalorder %s114, %s130
      %p132 = scmp.eq.s32.totalorder %s29, 0
      %p133 = por %p131, %p132
      %s134 = ssub.s32 %s32, %s41
      %s135 = ssub.s32 %s31, %s45
      %s136 = sor.u32 %s134, %s135
      %p137 = scmp.eq.s32.totalorder %s136, 0
      %s139 = sadd.s32 %s138, 1
      %s140 = scalar_select %p137, %s138, %s139
      %p143 = pneg %p137
      %p144 = scmp.eq.s32.totalorder %s23, 7
      %p145 = por %p143, %p144
      %p146 = scmp.ne.s32.totalorder %s138, %s141
      %p147 = scmp.eq.s32.totalorder %s23, 0
      %p148 = por %p146, %p147
      %p149 = scmp.ne.s32.totalorder %s138, %s141
      %p150 = scmp.eq.s32.totalorder %s28, 7
      %p151 = por %p149, %p150
      %p152 = scmp.ne.s32.totalorder %s141, %s142
      %p153 = scmp.eq.s32.totalorder %s28, 0
      %p154 = por %p152, %p153
      %p155 = scmp.ne.s32.totalorder %s141, %s142
      %p156 = scmp.eq.s32.totalorder %s29, 7
      %p157 = por %p155, %p156
      %p159 = scmp.ne.s32.totalorder %s142, %s158
      %p160 = scmp.eq.s32.totalorder %s29, 0
      %p161 = por %p159, %p160
      %s162 = ssub.s32 %s30, %s49
      %s163 = ssub.s32 %s31, %s45
      %s164 = sor.u32 %s162, %s163
      %p165 = scmp.eq.s32.totalorder %s164, 0
      %s167 = sadd.s32 %s166, 1
      %s168 = scalar_select %p165, %s166, %s167
      %p171 = pneg %p165
      %p172 = scmp.eq.s32.totalorder %s23, 7
      %p173 = por %p171, %p172
      %p174 = scmp.ne.s32.totalorder %s166, %s169
      %p175 = scmp.eq.s32.totalorder %s23, 0
      %p176 = por %p174, %p175
      %p177 = scmp.ne.s32.totalorder %s166, %s169
      %p178 = scmp.eq.s32.totalorder %s28, 7
      %p179 = por %p177, %p178
      %p180 = scmp.ne.s32.totalorder %s169, %s170
      %p181 = scmp.eq.s32.totalorder %s28, 0
      %p182 = por %p180, %p181
      %p183 = scmp.ne.s32.totalorder %s169, %s170
      %p184 = scmp.eq.s32.totalorder %s29, 7
      %p185 = por %p183, %p184
      %p187 = scmp.ne.s32.totalorder %s170, %s186
      %p188 = scmp.eq.s32.totalorder %s29, 0
      %p189 = por %p187, %p188
      %s190 = ssub.s32 %s30, %s49
      %s191 = ssub.s32 %s31, %s45
      %s192 = sor.u32 %s190, %s191
      %p193 = scmp.eq.s32.totalorder %s192, 0
      %s195 = sadd.s32 %s194, 1
      %s196 = scalar_select %p193, %s194, %s195
      %p199 = pneg %p193
      %p200 = scmp.eq.s32.totalorder %s23, 7
      %p201 = por %p199, %p200
      %p202 = scmp.ne.s32.totalorder %s194, %s197
      %p203 = scmp.eq.s32.totalorder %s23, 0
      %p204 = por %p202, %p203
      %p205 = scmp.ne.s32.totalorder %s194, %s197
      %p206 = scmp.eq.s32.totalorder %s28, 7
      %p207 = por %p205, %p206
      %p208 = scmp.ne.s32.totalorder %s197, %s198
      %p209 = scmp.eq.s32.totalorder %s28, 0
      %p210 = por %p208, %p209
      %p211 = scmp.ne.s32.totalorder %s197, %s198
      %p212 = scmp.eq.s32.totalorder %s29, 7
      %p213 = por %p211, %p212
      %p215 = scmp.ne.s32.totalorder %s198, %s214
      %p216 = scmp.eq.s32.totalorder %s29, 0
      %p217 = por %p215, %p216
      %p218 = scmp.le.s32.totalorder 1, %s23
      %p219 = scmp.lt.s32.totalorder %s23, 9
      %p220 = pnand %p218, %p219
      %p221 = pneg %p220
      // Predicated region
      $region9: #{tpu_custom_call.1} parent=5 // pred_check
        _
      $region10: #{tpu_custom_call.1} parent=5 // pred_check_branch
        %223 = sbr.rel (%p220) target = $region12
      $region11: #{tpu_custom_call.1} parent=5 // pred_region
        %s224 = ssub.s32 %s23, 1
      $region12: #{tpu_custom_call.1} parent=5 // pred_fallthru
        _
      %p225 = scmp.lt.s32.totalorder %s23, 8
      // Predicated region
      $region13: #{tpu_custom_call.1} parent=5 // pred_check
        %p226 = pneg %p225
      $region14: #{tpu_custom_call.1} parent=5 // pred_check_branch
        %228 = sbr.rel (%p226) target = $region16
      $region15: #{tpu_custom_call.1} parent=5 // pred_region
        // Predicated region
        $region17: #{tpu_custom_call.1} parent=15 // pred_check
          %p229 = pneg %p64
        $region18: #{tpu_custom_call.1} parent=15 // pred_check_branch
          %231 = sbr.rel (%p229) target = $region20
        $region19: #{tpu_custom_call.1} parent=15 // pred_region
          %s232 = sand.u32 %s54, 1
          %s233 = scalar_lea.sflag [#allocation5], %s232
          %s234 = sand.u32 %s54, 1
          %s235 = smul.addr %s234, 16
          %s236 = scalar_lea.vmem [#allocation4], %s235
          %s237 = smul.u32 2, %s30
          %s239 = ssub.s32 256, 256
          %240 = vsyncadd %s233, %s239
          %s241 = smul.addr %s237, 2
          %s242 = sadd.s32 %s32, %s241
          %s243 = smul.addr %s242, 128
          %s244 = scalar_lea.hbm %s0, %s243
          %s245 = sshll.u32 %s236, 4
          %s246 = int_to_ptr.vmem [resolvable:$true] %s245
          %251 = dma.hbm_to_vmem [thread:$0]  %s244, 256, %s246, %s233, 256, 128, 8
        $region20: #{tpu_custom_call.1} parent=15 // pred_fallthru
          _
        // Predicated region
        $region21: #{tpu_custom_call.1} parent=15 // pred_check
          %p252 = pneg %p92
        $region22: #{tpu_custom_call.1} parent=15 // pred_check_branch
          %254 = sbr.rel (%p252) target = $region24
        $region23: #{tpu_custom_call.1} parent=15 // pred_region
          %s255 = sand.u32 %s23, 1
          %s256 = scalar_lea.sflag [#allocation8], %s255
          %s257 = sand.u32 %s82, 1
          %s258 = smul.addr %s257, 128
          %s259 = scalar_lea.vmem [#allocation7], %s258
          %s260 = smul.u32 16, %s32
          %s262 = ssub.s32 2048, 2048
          %263 = vsyncadd %s256, %s262
          %s264 = smul.addr %s260, 4
          %s265 = sadd.s32 %s31, %s264
          %s266 = smul.addr %s265, 128
          %s267 = scalar_lea.hbm %s1, %s266
          %s268 = sshll.u32 %s259, 4
          %s269 = int_to_ptr.vmem [resolvable:$true] %s268
          %274 = dma.hbm_to_vmem [thread:$0]  %s267, 2048, %s269, %s256, 512, 128, 8
        $region24: #{tpu_custom_call.1} parent=15 // pred_fallthru
          _
        // Predicated region
        $region25: #{tpu_custom_call.1} parent=15 // pred_check
          %p275 = pneg %p120
        $region26: #{tpu_custom_call.1} parent=15 // pred_check_branch
          %277 = sbr.rel (%p275) target = $region28
        $region27: #{tpu_custom_call.1} parent=15 // pred_region
          %s278 = sand.u32 %s23, 1
          %s279 = scalar_lea.sflag [#allocation8], %s278
          %s280 = sand.u32 %s110, 1
          %s281 = smul.addr %s280, 128
          %s282 = scalar_lea.vmem [#allocation9], %s281
          %s283 = smul.u32 16, %s32
          %s285 = ssub.s32 2048, 2048
          %286 = vsyncadd %s279, %s285
          %s287 = smul.addr %s283, 4
          %s288 = sadd.s32 %s31, %s287
          %s289 = smul.addr %s288, 128
          %s290 = scalar_lea.hbm %s2, %s289
          %s291 = sshll.u32 %s282, 4
          %s292 = int_to_ptr.vmem [resolvable:$true] %s291
          %297 = dma.hbm_to_vmem [thread:$0]  %s290, 2048, %s292, %s279, 512, 128, 8
        $region28: #{tpu_custom_call.1} parent=15 // pred_fallthru
          _
        // Predicated region
        $region29: #{tpu_custom_call.1} parent=15 // pred_check
          %p298 = pneg %p148
        $region30: #{tpu_custom_call.1} parent=15 // pred_check_branch
          %300 = sbr.rel (%p298) target = $region32
        $region31: #{tpu_custom_call.1} parent=15 // pred_region
          %s301 = sand.u32 %s23, 1
          %s302 = scalar_lea.sflag [#allocation11], %s301
          %s303 = sand.u32 %s138, 1
          %s304 = smul.addr %s303, 128
          %s305 = scalar_lea.vmem [#allocation10], %s304
          %s306 = smul.u32 16, %s32
          %s308 = ssub.s32 2048, 2048
          %309 = vsyncadd %s302, %s308
          %s310 = smul.addr %s306, 4
          %s311 = sadd.s32 %s31, %s310
          %s312 = smul.addr %s311, 128
          %s313 = scalar_lea.hbm %s3, %s312
          %s314 = sshll.u32 %s305, 4
          %s315 = int_to_ptr.vmem [resolvable:$true] %s314
          %320 = dma.hbm_to_vmem [thread:$0]  %s313, 2048, %s315, %s302, 512, 128, 8
        $region32: #{tpu_custom_call.1} parent=15 // pred_fallthru
          _
        // Predicated region
        $region33: #{tpu_custom_call.1} parent=15 // pred_check
          %p321 = pneg %p176
        $region34: #{tpu_custom_call.1} parent=15 // pred_check_branch
          %323 = sbr.rel (%p321) target = $region36
        $region35: #{tpu_custom_call.1} parent=15 // pred_region
          %s324 = sand.u32 %s23, 1
          %s325 = scalar_lea.sflag [#allocation11], %s324
          %s326 = sand.u32 %s166, 1
          %s327 = smul.addr %s326, 16
          %s328 = scalar_lea.vmem [#allocation12], %s327
          %s329 = smul.u32 2, %s30
          %s331 = ssub.s32 256, 256
          %332 = vsyncadd %s325, %s331
          %s333 = smul.addr %s329, 4
          %s334 = sadd.s32 %s31, %s333
          %s335 = smul.addr %s334, 128
          %s336 = scalar_lea.hbm %s4, %s335
          %s337 = sshll.u32 %s328, 4
          %s338 = int_to_ptr.vmem [resolvable:$true] %s337
          %343 = dma.hbm_to_vmem [thread:$0]  %s336, 256, %s338, %s325, 512, 128, 8
        $region36: #{tpu_custom_call.1} parent=15 // pred_fallthru
          _
      $region16: #{tpu_custom_call.1} parent=5 // pred_fallthru
        _
      %p344 = scmp.le.s32.totalorder 1, %s23
      %p345 = scmp.lt.s32.totalorder %s23, 9
      %p346 = pnand %p344, %p345
      %p347 = pneg %p346
      // Predicated region
      $region37: #{tpu_custom_call.1} parent=5 // pred_check
        _
      $region38: #{tpu_custom_call.1} parent=5 // pred_check_branch
        %349 = sbr.rel (%p346) target = $region40
      $region39: #{tpu_custom_call.1} parent=5 // pred_region
        %s350 = ssub.s32 %s23, 1
        %s351 = sand.u32 %s57, 1
        %s352 = scalar_lea.sflag [#allocation5], %s351
        %s353 = sand.u32 %s57, 1
        %s354 = smul.addr %s353, 16
        %s355 = scalar_lea.vmem [#allocation4], %s354
        // Predicated region
        $region41: #{tpu_custom_call.1} parent=39 // pred_check
          %p356 = pneg %p70
        $region42: #{tpu_custom_call.1} parent=39 // pred_check_branch
          %358 = sbr.rel (%p356) target = $region44
        $region43: #{tpu_custom_call.1} parent=39 // pred_region
          %359 = dma.done %s352, 256
        $region44: #{tpu_custom_call.1} parent=39 // pred_fallthru
          _
        %s360 = sand.u32 %s28, 1
        %s361 = scalar_lea.sflag [#allocation8], %s360
        %s362 = sand.u32 %s85, 1
        %s363 = smul.addr %s362, 128
        %s364 = scalar_lea.vmem [#allocation7], %s363
        // Predicated region
        $region45: #{tpu_custom_call.1} parent=39 // pred_check
          %p365 = pneg %p98
        $region46: #{tpu_custom_call.1} parent=39 // pred_check_branch
          %367 = sbr.rel (%p365) target = $region48
        $region47: #{tpu_custom_call.1} parent=39 // pred_region
          %368 = dma.done %s361, 2048
        $region48: #{tpu_custom_call.1} parent=39 // pred_fallthru
          _
        %s369 = sand.u32 %s28, 1
        %s370 = scalar_lea.sflag [#allocation8], %s369
        %s371 = sand.u32 %s113, 1
        %s372 = smul.addr %s371, 128
        %s373 = scalar_lea.vmem [#allocation9], %s372
        // Predicated region
        $region49: #{tpu_custom_call.1} parent=39 // pred_check
          %p374 = pneg %p126
        $region50: #{tpu_custom_call.1} parent=39 // pred_check_branch
          %376 = sbr.rel (%p374) target = $region52
        $region51: #{tpu_custom_call.1} parent=39 // pred_region
          %377 = dma.done %s370, 2048
        $region52: #{tpu_custom_call.1} parent=39 // pred_fallthru
          _
        %s378 = sand.u32 %s28, 1
        %s379 = scalar_lea.sflag [#allocation11], %s378
        %s380 = sand.u32 %s141, 1
        %s381 = smul.addr %s380, 128
        %s382 = scalar_lea.vmem [#allocation10], %s381
        // Predicated region
        $region53: #{tpu_custom_call.1} parent=39 // pred_check
          %p383 = pneg %p154
        $region54: #{tpu_custom_call.1} parent=39 // pred_check_branch
          %385 = sbr.rel (%p383) target = $region56
        $region55: #{tpu_custom_call.1} parent=39 // pred_region
          %386 = dma.done %s379, 2048
        $region56: #{tpu_custom_call.1} parent=39 // pred_fallthru
          _
        %s387 = sand.u32 %s28, 1
        %s388 = scalar_lea.sflag [#allocation11], %s387
        %s389 = sand.u32 %s169, 1
        %s390 = smul.addr %s389, 16
        %s391 = scalar_lea.vmem [#allocation12], %s390
        // Predicated region
        $region57: #{tpu_custom_call.1} parent=39 // pred_check
          %p392 = pneg %p182
        $region58: #{tpu_custom_call.1} parent=39 // pred_check_branch
          %394 = sbr.rel (%p392) target = $region60
        $region59: #{tpu_custom_call.1} parent=39 // pred_region
          %395 = dma.done %s388, 256
        $region60: #{tpu_custom_call.1} parent=39 // pred_fallthru
          _
        %s396 = sand.u32 %s57, 1
        %s397 = scalar_lea.sflag [#allocation5], %s396
        %s398 = sand.u32 %s57, 1
        %s399 = smul.addr %s398, 16
        %s400 = scalar_lea.vmem [#allocation4], %s399
        %p401 = pneg %p70
        %p402 = pneg %p67
        %s403 = sand.u32 %s28, 1
        %s404 = scalar_lea.sflag [#allocation8], %s403
        %s405 = sand.u32 %s85, 1
        %s406 = smul.addr %s405, 128
        %s407 = scalar_lea.vmem [#allocation7], %s406
        %p408 = pneg %p98
        %p409 = pneg %p95
        %s410 = sand.u32 %s28, 1
        %s411 = scalar_lea.sflag [#allocation8], %s410
        %s412 = sand.u32 %s113, 1
        %s413 = smul.addr %s412, 128
        %s414 = scalar_lea.vmem [#allocation9], %s413
        %p415 = pneg %p126
        %p416 = pneg %p123
        %s417 = sand.u32 %s28, 1
        %s418 = scalar_lea.sflag [#allocation11], %s417
        %s419 = sand.u32 %s141, 1
        %s420 = smul.addr %s419, 128
        %s421 = scalar_lea.vmem [#allocation10], %s420
        %p422 = pneg %p154
        %p423 = pneg %p151
        %s424 = sand.u32 %s28, 1
        %s425 = scalar_lea.sflag [#allocation11], %s424
        %s426 = sand.u32 %s169, 1
        %s427 = smul.addr %s426, 16
        %s428 = scalar_lea.vmem [#allocation12], %s427
        %p429 = pneg %p182
        %p430 = pneg %p179
        %p431 = pneg %p210
        %p432 = pneg %p207
        %s433 = sand.u32 %s197, 1
        %s434 = scalar_lea.sflag [#allocation6], %s433
        %s435 = sand.u32 %s197, 1
        %s436 = smul.addr %s435, 16
        %s437 = scalar_lea.vmem [#allocation13], %s436
        %s438 = smul.u32 2, %s33
        %s439 = smul.u32 16, %s35
        %s440 = smul.u32 16, %s35
        %s441 = smul.u32 16, %s35
        %s442 = smul.u32 2, %s33
        %s443 = smul.u32 2, %s33
        %v444 = vld [vmem:[%s364] sm:$0xff]
        %v445 = vld [vmem:[%s364 + $0x8] sm:$0xff]
        %v446 = vld [vmem:[%s364 + $0x10] sm:$0xff]
        %v447 = vld [vmem:[%s364 + $0x18] sm:$0xff]
        %v448 = vld [vmem:[%s364 + $0x20] sm:$0xff]
        %v449 = vld [vmem:[%s364 + $0x28] sm:$0xff]
        %v450 = vld [vmem:[%s364 + $0x30] sm:$0xff]
        %v451 = vld [vmem:[%s364 + $0x38] sm:$0xff]
        %v452 = vld [vmem:[%s364 + $0x40] sm:$0xff]
        %v453 = vld [vmem:[%s364 + $0x48] sm:$0xff]
        %v454 = vld [vmem:[%s364 + $0x50] sm:$0xff]
        %v455 = vld [vmem:[%s364 + $0x58] sm:$0xff]
        %v456 = vld [vmem:[%s364 + $0x60] sm:$0xff]
        %v457 = vld [vmem:[%s364 + $0x68] sm:$0xff]
        %v458 = vld [vmem:[%s364 + $0x70] sm:$0xff]
        %v459 = vld [vmem:[%s364 + $0x78] sm:$0xff]
        %v460 = vld [vmem:[%s373] sm:$0xff]
        %v461 = vld [vmem:[%s373 + $0x8] sm:$0xff]
        %v462 = vld [vmem:[%s373 + $0x10] sm:$0xff]
        %v463 = vld [vmem:[%s373 + $0x18] sm:$0xff]
        %v464 = vld [vmem:[%s373 + $0x20] sm:$0xff]
        %v465 = vld [vmem:[%s373 + $0x28] sm:$0xff]
        %v466 = vld [vmem:[%s373 + $0x30] sm:$0xff]
        %v467 = vld [vmem:[%s373 + $0x38] sm:$0xff]
        %v468 = vld [vmem:[%s373 + $0x40] sm:$0xff]
        %v469 = vld [vmem:[%s373 + $0x48] sm:$0xff]
        %v470 = vld [vmem:[%s373 + $0x50] sm:$0xff]
        %v471 = vld [vmem:[%s373 + $0x58] sm:$0xff]
        %v472 = vld [vmem:[%s373 + $0x60] sm:$0xff]
        %v473 = vld [vmem:[%s373 + $0x68] sm:$0xff]
        %v474 = vld [vmem:[%s373 + $0x70] sm:$0xff]
        %v475 = vld [vmem:[%s373 + $0x78] sm:$0xff]
        %v476 = vld [vmem:[%s382] sm:$0xff]
        %v477 = vld [vmem:[%s382 + $0x8] sm:$0xff]
        %v478 = vld [vmem:[%s382 + $0x10] sm:$0xff]
        %v479 = vld [vmem:[%s382 + $0x18] sm:$0xff]
        %v480 = vld [vmem:[%s382 + $0x20] sm:$0xff]
        %v481 = vld [vmem:[%s382 + $0x28] sm:$0xff]
        %v482 = vld [vmem:[%s382 + $0x30] sm:$0xff]
        %v483 = vld [vmem:[%s382 + $0x38] sm:$0xff]
        %v484 = vld [vmem:[%s382 + $0x40] sm:$0xff]
        %v485 = vld [vmem:[%s382 + $0x48] sm:$0xff]
        %v486 = vld [vmem:[%s382 + $0x50] sm:$0xff]
        %v487 = vld [vmem:[%s382 + $0x58] sm:$0xff]
        %v488 = vld [vmem:[%s382 + $0x60] sm:$0xff]
        %v489 = vld [vmem:[%s382 + $0x68] sm:$0xff]
        %v490 = vld [vmem:[%s382 + $0x70] sm:$0xff]
        %v491 = vld [vmem:[%s382 + $0x78] sm:$0xff]
        %v492 = vsub.f32 1.0, %v460
        %v493 = vsub.f32 1.0, %v461
        %v494 = vsub.f32 1.0, %v462
        %v495 = vsub.f32 1.0, %v463
        %v496 = vsub.f32 1.0, %v464
        %v497 = vsub.f32 1.0, %v465
        %v498 = vsub.f32 1.0, %v466
        %v499 = vsub.f32 1.0, %v467
        %v500 = vsub.f32 1.0, %v468
        %v501 = vsub.f32 1.0, %v469
        %v502 = vsub.f32 1.0, %v470
        %v503 = vsub.f32 1.0, %v471
        %v504 = vsub.f32 1.0, %v472
        %v505 = vsub.f32 1.0, %v473
        %v506 = vsub.f32 1.0, %v474
        %v507 = vsub.f32 1.0, %v475
        %v508 = vmul.f32 %v492, %v444
        %v509 = vmul.f32 %v493, %v445
        %v510 = vmul.f32 %v494, %v446
        %v511 = vmul.f32 %v495, %v447
        %v512 = vmul.f32 %v496, %v448
        %v513 = vmul.f32 %v497, %v449
        %v514 = vmul.f32 %v498, %v450
        %v515 = vmul.f32 %v499, %v451
        %v516 = vmul.f32 %v500, %v452
        %v517 = vmul.f32 %v501, %v453
        %v518 = vmul.f32 %v502, %v454
        %v519 = vmul.f32 %v503, %v455
        %v520 = vmul.f32 %v504, %v456
        %v521 = vmul.f32 %v505, %v457
        %v522 = vmul.f32 %v506, %v458
        %v523 = vmul.f32 %v507, %v459
        %v524 = vmul.f32 %v492, %v476
        %v525 = vmul.f32 %v493, %v477
        %v526 = vmul.f32 %v494, %v478
        %v527 = vmul.f32 %v495, %v479
        %v528 = vmul.f32 %v496, %v480
        %v529 = vmul.f32 %v497, %v481
        %v530 = vmul.f32 %v498, %v482
        %v531 = vmul.f32 %v499, %v483
        %v532 = vmul.f32 %v500, %v484
        %v533 = vmul.f32 %v501, %v485
        %v534 = vmul.f32 %v502, %v486
        %v535 = vmul.f32 %v503, %v487
        %v536 = vmul.f32 %v504, %v488
        %v537 = vmul.f32 %v505, %v489
        %v538 = vmul.f32 %v506, %v490
        %v539 = vmul.f32 %v507, %v491
        %v540 = vmul.f32 %v460, %v492
        %v541 = vmul.f32 %v461, %v493
        %v542 = vmul.f32 %v462, %v494
        %v543 = vmul.f32 %v463, %v495
        %v544 = vmul.f32 %v464, %v496
        %v545 = vmul.f32 %v465, %v497
        %v546 = vmul.f32 %v466, %v498
        %v547 = vmul.f32 %v467, %v499
        %v548 = vmul.f32 %v468, %v500
        %v549 = vmul.f32 %v469, %v501
        %v550 = vmul.f32 %v470, %v502
        %v551 = vmul.f32 %v471, %v503
        %v552 = vmul.f32 %v472, %v504
        %v553 = vmul.f32 %v473, %v505
        %v554 = vmul.f32 %v474, %v506
        %v555 = vmul.f32 %v475, %v507
        %v556 = vmul.f32 %v444, %v444
        %v557 = vmul.f32 %v445, %v445
        %v558 = vmul.f32 %v446, %v446
        %v559 = vmul.f32 %v447, %v447
        %v560 = vmul.f32 %v448, %v448
        %v561 = vmul.f32 %v449, %v449
        %v562 = vmul.f32 %v450, %v450
        %v563 = vmul.f32 %v451, %v451
        %v564 = vmul.f32 %v452, %v452
        %v565 = vmul.f32 %v453, %v453
        %v566 = vmul.f32 %v454, %v454
        %v567 = vmul.f32 %v455, %v455
        %v568 = vmul.f32 %v456, %v456
        %v569 = vmul.f32 %v457, %v457
        %v570 = vmul.f32 %v458, %v458
        %v571 = vmul.f32 %v459, %v459
        %v572 = vmul.f32 %v540, %v556
        %v573 = vmul.f32 %v541, %v557
        %v574 = vmul.f32 %v542, %v558
        %v575 = vmul.f32 %v543, %v559
        %v576 = vmul.f32 %v544, %v560
        %v577 = vmul.f32 %v545, %v561
        %v578 = vmul.f32 %v546, %v562
        %v579 = vmul.f32 %v547, %v563
        %v580 = vmul.f32 %v548, %v564
        %v581 = vmul.f32 %v549, %v565
        %v582 = vmul.f32 %v550, %v566
        %v583 = vmul.f32 %v551, %v567
        %v584 = vmul.f32 %v552, %v568
        %v585 = vmul.f32 %v553, %v569
        %v586 = vmul.f32 %v554, %v570
        %v587 = vmul.f32 %v555, %v571
        %v588 = vadd.f32 %v524, %v572
        %v589 = vadd.f32 %v525, %v573
        %v590 = vadd.f32 %v526, %v574
        %v591 = vadd.f32 %v527, %v575
        %v592 = vadd.f32 %v528, %v576
        %v593 = vadd.f32 %v529, %v577
        %v594 = vadd.f32 %v530, %v578
        %v595 = vadd.f32 %v531, %v579
        %v596 = vadd.f32 %v532, %v580
        %v597 = vadd.f32 %v533, %v581
        %v598 = vadd.f32 %v534, %v582
        %v599 = vadd.f32 %v535, %v583
        %v600 = vadd.f32 %v536, %v584
        %v601 = vadd.f32 %v537, %v585
        %v602 = vadd.f32 %v538, %v586
        %v603 = vadd.f32 %v539, %v587
        %v604 = vld [vmem:[%s355] sm:$0xff]
        %v605 = vld [vmem:[%s355 + $0x8] sm:$0xff]
        %606 = vmatprep.subr.mxu0 0.0
        %607 = vmatpush1.msra.mxu0 %v508
        %608 = vmatprep.subr.mxu0 0.0
        %609 = vmatpush1.msra.mxu0 %v509
        %610 = vmatprep.subr.mxu0 0.0
        %611 = vmatpush1.msra.mxu0 %v510
        %612 = vmatprep.subr.mxu0 0.0
        %613 = vmatpush1.msra.mxu0 %v511
        %614 = vmatprep.subr.mxu0 0.0
        %615 = vmatpush1.msra.mxu0 %v512
        %616 = vmatprep.subr.mxu0 0.0
        %617 = vmatpush1.msra.mxu0 %v513
        %618 = vmatprep.subr.mxu0 0.0
        %619 = vmatpush1.msra.mxu0 %v514
        %620 = vmatprep.subr.mxu0 0.0
        %621 = vmatpush1.msra.mxu0 %v515
        %622 = vmatprep.subr.mxu0 0.0
        %623 = vmatpush1.msra.mxu0 %v516
        %624 = vmatprep.subr.mxu0 0.0
        %625 = vmatpush1.msra.mxu0 %v517
        %626 = vmatprep.subr.mxu0 0.0
        %627 = vmatpush1.msra.mxu0 %v518
        %628 = vmatprep.subr.mxu0 0.0
        %629 = vmatpush1.msra.mxu0 %v519
        %630 = vmatprep.subr.mxu0 0.0
        %631 = vmatpush1.msra.mxu0 %v520
        %632 = vmatprep.subr.mxu0 0.0
        %633 = vmatpush1.msra.mxu0 %v521
        %634 = vmatprep.subr.mxu0 0.0
        %635 = vmatpush1.msra.mxu0 %v522
        %636 = vmatprep.subr.mxu0 0.0
        %637 = vmatpush1.msra.mxu0 %v523
        %638 = vmatprep.subr.mxu0 0.0
        %639 = vmatpush1.msra.mxu0 0.0
        %640 = vmatprep.subr.mxu0 0.0
        %641 = vmatpush1.msra.mxu0 0.0
        %642 = vmatprep.subr.mxu0 0.0
        %643 = vmatpush1.msra.mxu0 0.0
        %644 = vmatprep.subr.mxu0 0.0
        %645 = vmatpush1.msra.mxu0 0.0
        %646 = vmatprep.subr.mxu0 0.0
        %647 = vmatpush1.msra.mxu0 0.0
        %648 = vmatprep.subr.mxu0 0.0
        %649 = vmatpush1.msra.mxu0 0.0
        %650 = vmatprep.subr.mxu0 0.0
        %651 = vmatpush1.msra.mxu0 0.0
        %652 = vmatprep.subr.mxu0 0.0
        %653 = vmatpush1.msra.mxu0 0.0
        %654 = vmatprep.subr.mxu0 0.0
        %655 = vmatpush1.msra.mxu0 0.0
        %656 = vmatprep.subr.mxu0 0.0
        %657 = vmatpush1.msra.mxu0 0.0
        %658 = vmatprep.subr.mxu0 0.0
        %659 = vmatpush1.msra.mxu0 0.0
        %660 = vmatprep.subr.mxu0 0.0
        %661 = vmatpush1.msra.mxu0 0.0
        %662 = vmatprep.subr.mxu0 0.0
        %663 = vmatpush1.msra.mxu0 0.0
        %664 = vmatprep.subr.mxu0 0.0
        %665 = vmatpush1.msra.mxu0 0.0
        %666 = vmatprep.subr.mxu0 0.0
        %667 = vmatpush1.msra.mxu0 0.0
        %668 = vmatprep.subr.mxu0 0.0
        %669 = vmatpush1.msra.mxu0 0.0
        %670 = vmatprep.mubr.f32.mxu0 0.0
        %671 = vmatmul.mubr.f32.gmra.mrb[0].mxu0 %v604
        %v672 = vpop.f32.mrb[0].mxu0
        %v673 = vadd.f32 0.0, %v672
        %v674 = vpop.f32.mrb[0].mxu0
        %675 = vmatprep.mubr.f32.mxu0 0.0
        %676 = vmatmul.mubr.f32.gmra.mrb[0].mxu0 %v605
        %v677 = vpop.f32.mrb[0].mxu0
        %v678 = vadd.f32 0.0, %v677
        %v679 = vpop.f32.mrb[0].mxu0
        %680 = vdwg.mxu0
        %v681 = vmul.f32 %v604, %v604
        %v682 = vmul.f32 %v605, %v605
        %683 = vmatprep.subr.mxu0 0.0
        %684 = vmatpush1.msra.mxu0 %v588
        %685 = vmatprep.subr.mxu0 0.0
        %686 = vmatpush1.msra.mxu0 %v589
        %687 = vmatprep.subr.mxu0 0.0
        %688 = vmatpush1.msra.mxu0 %v590
        %689 = vmatprep.subr.mxu0 0.0
        %690 = vmatpush1.msra.mxu0 %v591
        %691 = vmatprep.subr.mxu0 0.0
        %692 = vmatpush1.msra.mxu0 %v592
        %693 = vmatprep.subr.mxu0 0.0
        %694 = vmatpush1.msra.mxu0 %v593
        %695 = vmatprep.subr.mxu0 0.0
        %696 = vmatpush1.msra.mxu0 %v594
        %697 = vmatprep.subr.mxu0 0.0
        %698 = vmatpush1.msra.mxu0 %v595
        %699 = vmatprep.subr.mxu0 0.0
        %700 = vmatpush1.msra.mxu0 %v596
        %701 = vmatprep.subr.mxu0 0.0
        %702 = vmatpush1.msra.mxu0 %v597
        %703 = vmatprep.subr.mxu0 0.0
        %704 = vmatpush1.msra.mxu0 %v598
        %705 = vmatprep.subr.mxu0 0.0
        %706 = vmatpush1.msra.mxu0 %v599
        %707 = vmatprep.subr.mxu0 0.0
        %708 = vmatpush1.msra.mxu0 %v600
        %709 = vmatprep.subr.mxu0 0.0
        %710 = vmatpush1.msra.mxu0 %v601
        %711 = vmatprep.subr.mxu0 0.0
        %712 = vmatpush1.msra.mxu0 %v602
        %713 = vmatprep.subr.mxu0 0.0
        %714 = vmatpush1.msra.mxu0 %v603
        %715 = vmatprep.subr.mxu0 0.0
        %716 = vmatpush1.msra.mxu0 0.0
        %717 = vmatprep.subr.mxu0 0.0
        %718 = vmatpush1.msra.mxu0 0.0
        %719 = vmatprep.subr.mxu0 0.0
        %720 = vmatpush1.msra.mxu0 0.0
        %721 = vmatprep.subr.mxu0 0.0
        %722 = vmatpush1.msra.mxu0 0.0
        %723 = vmatprep.subr.mxu0 0.0
        %724 = vmatpush1.msra.mxu0 0.0
        %725 = vmatprep.subr.mxu0 0.0
        %726 = vmatpush1.msra.mxu0 0.0
        %727 = vmatprep.subr.mxu0 0.0
        %728 = vmatpush1.msra.mxu0 0.0
        %729 = vmatprep.subr.mxu0 0.0
        %730 = vmatpush1.msra.mxu0 0.0
        %731 = vmatprep.subr.mxu0 0.0
        %732 = vmatpush1.msra.mxu0 0.0
        %733 = vmatprep.subr.mxu0 0.0
        %734 = vmatpush1.msra.mxu0 0.0
        %735 = vmatprep.subr.mxu0 0.0
        %736 = vmatpush1.msra.mxu0 0.0
        %737 = vmatprep.subr.mxu0 0.0
        %738 = vmatpush1.msra.mxu0 0.0
        %739 = vmatprep.subr.mxu0 0.0
        %740 = vmatpush1.msra.mxu0 0.0
        %741 = vmatprep.subr.mxu0 0.0
        %742 = vmatpush1.msra.mxu0 0.0
        %743 = vmatprep.subr.mxu0 0.0
        %744 = vmatpush1.msra.mxu0 0.0
        %745 = vmatprep.subr.mxu0 0.0
        %746 = vmatpush1.msra.mxu0 0.0
        %747 = vmatprep.mubr.f32.mxu0 0.0
        %748 = vmatmul.mubr.f32.gmra.mrb[0].mxu0 %v681
        %v749 = vpop.f32.mrb[0].mxu0
        %v750 = vadd.f32 0.0, %v749
        %v751 = vpop.f32.mrb[0].mxu0
        %752 = vmatprep.mubr.f32.mxu0 0.0
        %753 = vmatmul.mubr.f32.gmra.mrb[0].mxu0 %v682
        %v754 = vpop.f32.mrb[0].mxu0
        %v755 = vadd.f32 0.0, %v754
        %v756 = vpop.f32.mrb[0].mxu0
        %757 = vdwg.mxu0
        %p758 = scmp.eq.s32.totalorder %s35, 0
        // Predicated region
        $region61: #{tpu_custom_call.1} parent=39 // pred_check
          %p759 = pneg %p758
        $region62: #{tpu_custom_call.1} parent=39 // pred_check_branch
          %761 = sbr.rel (%p759) target = $region64
        $region63: #{tpu_custom_call.1} parent=39 // pred_region
          %762 = vst [vmem:[#allocation2] sm:$0xff] %v673
          %763 = vst [vmem:[#allocation2 + $0x8] sm:$0xff] %v678
          %764 = vst [vmem:[#allocation3] sm:$0xff] %v750
          %765 = vst [vmem:[#allocation3 + $0x8] sm:$0xff] %v755
        $region64: #{tpu_custom_call.1} parent=39 // pred_fallthru
          _
        %p766 = scmp.gt.s32.totalorder %s35, 0
        // Predicated region
        $region65: #{tpu_custom_call.1} parent=39 // pred_check
          %p767 = pneg %p766
        $region66: #{tpu_custom_call.1} parent=39 // pred_check_branch
          %769 = sbr.rel (%p767) target = $region68
        $region67: #{tpu_custom_call.1} parent=39 // pred_region
          %v770 = vld [vmem:[#allocation2] sm:$0xff]
          %v771 = vld [vmem:[#allocation2 + $0x8] sm:$0xff]
          %v772 = vadd.f32 %v770, %v673
          %v773 = vadd.f32 %v771, %v678
          %774 = vst [vmem:[#allocation2] sm:$0xff] %v772
          %775 = vst [vmem:[#allocation2 + $0x8] sm:$0xff] %v773
          %v776 = vld [vmem:[#allocation3] sm:$0xff]
          %v777 = vld [vmem:[#allocation3 + $0x8] sm:$0xff]
          %v778 = vadd.f32 %v776, %v750
          %v779 = vadd.f32 %v777, %v755
          %780 = vst [vmem:[#allocation3] sm:$0xff] %v778
          %781 = vst [vmem:[#allocation3 + $0x8] sm:$0xff] %v779
        $region68: #{tpu_custom_call.1} parent=39 // pred_fallthru
          _
        %p782 = scmp.eq.s32.totalorder %s35, 1
        // Predicated region
        $region69: #{tpu_custom_call.1} parent=39 // pred_check
          %p783 = pneg %p782
        $region70: #{tpu_custom_call.1} parent=39 // pred_check_branch
          %785 = sbr.rel (%p783) target = $region72
        $region71: #{tpu_custom_call.1} parent=39 // pred_region
          %v786 = vld [vmem:[#allocation2] sm:$0xff]
          %v787 = vld [vmem:[#allocation2 + $0x8] sm:$0xff]
          %v788 = vld [vmem:[%s391] sm:$0xff]
          %v789 = vld [vmem:[%s391 + $0x8] sm:$0xff]
          %v790 = vld [vmem:[#allocation3] sm:$0xff]
          %v791 = vld [vmem:[#allocation3 + $0x8] sm:$0xff]
          %v792 = vadd.f32 %v790, 1e-10
          %v793 = vadd.f32 %v791, 1e-10
          %v794 = vrsqrt.pop %v792
          %v795 = vmul.f32 %v792, %v794
          %vm796 = vcmp.eq.f32.partialorder %v792, inf
          %v797 = vsel %vm796, %v792, %v795
          %vm798 = vcmp.eq.f32.partialorder %v792, 0.0
          %v799 = vand.u32 %v792, 2147483648
          %v800 = vsel %vm798, %v799, %v797
          %v801 = vrsqrt.pop %v793
          %v802 = vmul.f32 %v793, %v801
          %vm803 = vcmp.eq.f32.partialorder %v793, inf
          %v804 = vsel %vm803, %v793, %v802
          %vm805 = vcmp.eq.f32.partialorder %v793, 0.0
          %v806 = vand.u32 %v793, 2147483648
          %v807 = vsel %vm805, %v806, %v804
          %v808 = vmul.f32 %v788, %v800
          %v809 = vmul.f32 %v789, %v807
          %v810 = vadd.f32 %v786, %v808
          %v811 = vadd.f32 %v787, %v809
          %812 = vst [vmem:[%s437] sm:$0xff] %v810
          %813 = vst [vmem:[%s437 + $0x8] sm:$0xff] %v811
        $region72: #{tpu_custom_call.1} parent=39 // pred_fallthru
          _
        %s814 = sand.u32 %s197, 1
        %s815 = scalar_lea.sflag [#allocation6], %s814
        %s816 = sand.u32 %s197, 1
        %s817 = smul.addr %s816, 16
        %s818 = scalar_lea.vmem [#allocation13], %s817
        // Predicated region
        $region73: #{tpu_custom_call.1} parent=39 // pred_check
          %p819 = pneg %p207
        $region74: #{tpu_custom_call.1} parent=39 // pred_check_branch
          %821 = sbr.rel (%p819) target = $region76
        $region75: #{tpu_custom_call.1} parent=39 // pred_region
          %s822 = smul.u32 2, %s33
          %s824 = ssub.s32 256, 256
          %825 = vsyncadd %s815, %s824
          %s826 = smul.addr %s822, 4
          %s827 = sadd.s32 %s34, %s826
          %s828 = smul.addr %s827, 128
          %s829 = scalar_lea.hbm %s5, %s828
          %s830 = sshll.u32 %s818, 4
          %s831 = int_to_ptr.vmem [resolvable:$true] %s830
          %836 = dma.vmem_to_hbm [thread:$0]  %s831, 256, %s829, %s815, 128, 512, 8
        $region76: #{tpu_custom_call.1} parent=39 // pred_fallthru
          _
      $region40: #{tpu_custom_call.1} parent=5 // pred_fallthru
        _
      %p837 = scmp.le.s32.totalorder 2, %s23
      // Predicated region
      $region77: #{tpu_custom_call.1} parent=5 // pred_check
        %p838 = pneg %p837
      $region78: #{tpu_custom_call.1} parent=5 // pred_check_branch
        %840 = sbr.rel (%p838) target = $region80
      $region79: #{tpu_custom_call.1} parent=5 // pred_region
        %s841 = ssub.s32 %s23, 2
        // Predicated region
        $region81: #{tpu_custom_call.1} parent=79 // pred_check
          %p842 = pneg %p213
        $region82: #{tpu_custom_call.1} parent=79 // pred_check_branch
          %844 = sbr.rel (%p842) target = $region84
        $region83: #{tpu_custom_call.1} parent=79 // pred_region
          %s845 = sand.u32 %s198, 1
          %s846 = scalar_lea.sflag [#allocation6], %s845
          %s847 = sand.u32 %s198, 1
          %s848 = smul.addr %s847, 16
          %s849 = scalar_lea.vmem [#allocation13], %s848
          %850 = dma.done %s846, 256
        $region84: #{tpu_custom_call.1} parent=79 // pred_fallthru
          _
      $region80: #{tpu_custom_call.1} parent=5 // pred_fallthru
        _
    $region6: #{tpu_custom_call.1} parent=1 // loop_footer
      %s27 = sadd.s32 1, %s23
    $region7: #{tpu_custom_call.1} parent=1 // loop_footer_branch
      %22 = sbr.rel target = $region3
    $region8: #{tpu_custom_call.1} parent=1 // loop_exit
      _
    %851 = vsyncpa [#allocation5], 1
    %s852 = scalar_lea.sflag [#allocation5], 1
    %853 = vsyncpa %s852, 1
    %854 = vsyncpa [#allocation8], 1
    %s855 = scalar_lea.sflag [#allocation8], 1
    %856 = vsyncpa %s855, 1
    %857 = vsyncpa [#allocation11], 1
    %s858 = scalar_lea.sflag [#allocation11], 1
    %859 = vsyncpa %s858, 1
    %860 = vsyncpa [#allocation6], 1
    %s861 = scalar_lea.sflag [#allocation6], 1
    %862 = vsyncpa %s861, 1

</llo_original>
